<compile_context>
chip_gen: v5e
topology: v5e:2x2
jax: 0.10.0
libtpu: 0.0.40
codegen_flags: <defaults>
</compile_context>

<pallas_src>
import jax
import jax.numpy as jnp
from jax import lax
from jax.experimental import pallas as pl
from jax.experimental.pallas import tpu as pltpu


def _global_attention_kernel(delta_ref, x_ref, ws_ref, bs_ref, wc_ref, bc_ref, o_ref):
    # delta_ref : SMEM (1,) f32 scalar parameter
    # x_ref     : VMEM (C, S)  one batch element, spatially flattened
    # ws_ref    : VMEM (k, S)  linear_s weight
    # bs_ref    : VMEM (1, k)  linear_s bias
    # wc_ref    : VMEM (k, C)  linear_c weight
    # bc_ref    : VMEM (k, 1)  linear_c bias
    # o_ref     : VMEM (C, S)
    x = x_ref[...]

    # Attention_s = x @ W_s^T + b_s                      -> (C, k)
    att_s = lax.dot_general(
        x, ws_ref[...],
        dimension_numbers=(((1,), (1,)), ((), ())),
        preferred_element_type=jnp.float32,
    ) + bs_ref[...]

    # Attention_c = W_c @ x + b_c[:, None]               -> (k, S)
    att_c = jnp.dot(
        wc_ref[...], x, preferred_element_type=jnp.float32
    ) + bc_ref[...]

    # out = input + delta * (Attention_s @ Attention_c)  -> (C, S)
    bmm = jnp.dot(att_s, att_c, preferred_element_type=jnp.float32)
    o_ref[...] = (x.astype(jnp.float32) + delta_ref[0] * bmm).astype(o_ref.dtype)


def global_attention_forward(inp, w_s, b_s, w_c, b_c, delta):
    """inp: (B, C, H, W); w_s: (k, H*W); b_s: (k,); w_c: (k, C); b_c: (k,); delta: (1,)."""
    B, C, H, W = inp.shape
    S = H * W
    k = w_s.shape[0]
    assert w_s.shape == (k, S), "linear_s expects in_features == H*W"
    assert w_c.shape == (k, C), "linear_c expects in_features == C"

    x = inp.reshape(B, C, S)
    bs2 = b_s.reshape(1, k).astype(jnp.float32)
    bc2 = b_c.reshape(k, 1).astype(jnp.float32)
    delta_arr = jnp.asarray(delta, dtype=jnp.float32).reshape(1)

    # TODO(synk): for very large H*W (where a full (C, S) slab no longer fits VMEM)
    # this needs an S-tiled two-pass variant (accumulate Attention_s over S tiles,
    # then emit output S tiles); not required at the module's intended spatial sizes.
    out = pl.pallas_call(
        _global_attention_kernel,
        out_shape=jax.ShapeDtypeStruct((B, C, S), inp.dtype),
        grid_spec=pltpu.PrefetchScalarGridSpec(
            num_scalar_prefetch=0,
            grid=(B,),
            in_specs=[
                pl.BlockSpec(memory_space=pltpu.SMEM),              # delta (scalar path)
                pl.BlockSpec((None, C, S), lambda b: (b, 0, 0)),    # x[b]
                pl.BlockSpec((k, S), lambda b: (0, 0)),             # W_s (VMEM-resident)
                pl.BlockSpec((1, k), lambda b: (0, 0)),             # b_s
                pl.BlockSpec((k, C), lambda b: (0, 0)),             # W_c
                pl.BlockSpec((k, 1), lambda b: (0, 0)),             # b_c
            ],
            out_specs=pl.BlockSpec((None, C, S), lambda b: (b, 0, 0)),
        ),
        compiler_params=pltpu.CompilerParams(
            dimension_semantics=("parallel",),
        ),
    )(delta_arr, x, w_s, bs2, w_c, bc2)

    return out.reshape(B, C, H, W)


def global_attention_reference(inp, w_s, b_s, w_c, b_c, delta):
    B, C, H, W = inp.shape
    x = inp.reshape(B, C, H * W)
    att_s = jnp.einsum("bcs,ks->bck", x, w_s) + b_s             # (B, C, k)
    att_c = jnp.einsum("kc,bcs->bks", w_c, x) + b_c[:, None]    # (B, k, S)
    out = jnp.einsum("bck,bks->bcs", att_s, att_c)              # (B, C, S)
    d = jnp.asarray(delta, jnp.float32).reshape(())
    return inp + d * out.reshape(B, C, H, W)


if __name__ == "__main__":
    key = jax.random.PRNGKey(0)
    k1, k2, k3, k4, k5 = jax.random.split(key, 5)

    # Small shapes: batch=2, channels=4, spatial=16x16, k=32
    B, C, H, W, K = 2, 4, 16, 16, 32
    S = H * W

    x = jax.random.normal(k1, (B, C, H, W), dtype=jnp.float32)
    w_s = jax.random.normal(k2, (K, S), dtype=jnp.float32) * 0.05   # linear_s: S -> K
    b_s = jax.random.normal(k3, (K,), dtype=jnp.float32) * 0.05
    w_c = jax.random.normal(k4, (K, C), dtype=jnp.float32) * 0.05   # linear_c: C -> K
    b_c = jax.random.normal(k5, (K,), dtype=jnp.float32) * 0.05

    # deterministic parameter init: delta = 0.1 (as in the module __init__)
    delta = jnp.array([0.1], dtype=jnp.float32)

    out = global_attention_forward(x, w_s, b_s, w_c, b_c, delta)
    out = jax.block_until_ready(out)

    ref = global_attention_reference(x, w_s, b_s, w_c, b_c, delta)
    assert out.shape == (B, C, H, W)
    assert jnp.allclose(out, ref, atol=1e-2, rtol=1e-2)

    print("KERNEL_OK")
</pallas_src>

<mosaic_0001>
module attributes {stable_mosaic.version = 11 : i64} {
  func.func @_global_attention_kernel(%arg0: i32, %arg1: memref<1xf32, #tpu.memory_space<smem>>, %arg2: memref<1x4x256xf32, #tpu.memory_space<vmem>>, %arg3: memref<32x256xf32, #tpu.memory_space<vmem>>, %arg4: memref<1x32xf32, #tpu.memory_space<vmem>>, %arg5: memref<32x4xf32, #tpu.memory_space<vmem>>, %arg6: memref<32x1xf32, #tpu.memory_space<vmem>>, %arg7: memref<1x4x256xf32, #tpu.memory_space<vmem>>) attributes {dimension_semantics = [#tpu.dimension_semantics<parallel>], iteration_bounds = array<i64: 2>, scalar_prefetch = 0 : i64, scratch_operands = 0 : i64, tpu.core_type = #tpu.core_type<tc>, window_params = [{transform_indices = @transform_0, window_bounds = array<i64: 1>}, {transform_indices = @transform_1, window_bounds = array<i64: 1, 4, 256>}, {pipeline_mode = #tpu.pipeline_mode<synchronous>, transform_indices = @transform_2, window_bounds = array<i64: 32, 256>}, {pipeline_mode = #tpu.pipeline_mode<synchronous>, transform_indices = @transform_3, window_bounds = array<i64: 1, 32>}, {pipeline_mode = #tpu.pipeline_mode<synchronous>, transform_indices = @transform_4, window_bounds = array<i64: 32, 4>}, {pipeline_mode = #tpu.pipeline_mode<synchronous>, transform_indices = @transform_5, window_bounds = array<i64: 32, 1>}, {transform_indices = @transform_6, window_bounds = array<i64: 1, 4, 256>}]} {
    %c0 = arith.constant 0 : index
    %c0_0 = arith.constant 0 : index
    %c0_1 = arith.constant 0 : index
    %0 = vector.load %arg2[%c0, %c0_0, %c0_1] : memref<1x4x256xf32, #tpu.memory_space<vmem>>, vector<1x4x256xf32>
    %1 = vector.shape_cast %0 : vector<1x4x256xf32> to vector<4x256xf32>
    %c0_2 = arith.constant 0 : index
    %c0_3 = arith.constant 0 : index
    %2 = vector.load %arg3[%c0_2, %c0_3] : memref<32x256xf32, #tpu.memory_space<vmem>>, vector<32x256xf32>
    %cst = arith.constant dense<0.000000e+00> : vector<4x32xf32>
    %3 = tpu.matmul %1, %2, %cst {dimension_numbers = #tpu.dot_dimension_numbers<[1], [1], [0], [0], [0, 0, 1, 0], [], []>} : vector<4x256xf32>, vector<32x256xf32>, vector<4x32xf32> -> vector<4x32xf32>
    %c0_4 = arith.constant 0 : index
    %c0_5 = arith.constant 0 : index
    %4 = vector.load %arg4[%c0_4, %c0_5] : memref<1x32xf32, #tpu.memory_space<vmem>>, vector<1x32xf32>
    %5 = vector.broadcast %4 : vector<1x32xf32> to vector<4x32xf32>
    %6 = arith.addf %3, %5 : vector<4x32xf32>
    %c0_6 = arith.constant 0 : index
    %c0_7 = arith.constant 0 : index
    %7 = vector.load %arg5[%c0_6, %c0_7] : memref<32x4xf32, #tpu.memory_space<vmem>>, vector<32x4xf32>
    %cst_8 = arith.constant dense<0.000000e+00> : vector<32x256xf32>
    %8 = tpu.matmul %7, %1, %cst_8 {dimension_numbers = #tpu.dot_dimension_numbers<[1], [0], [0], [1], [0, 0, 1, 1], [], []>} : vector<32x4xf32>, vector<4x256xf32>, vector<32x256xf32> -> vector<32x256xf32>
    %c0_9 = arith.constant 0 : index
    %c0_10 = arith.constant 0 : index
    %9 = vector.load %arg6[%c0_9, %c0_10] : memref<32x1xf32, #tpu.memory_space<vmem>>, vector<32x1xf32>
    %10 = vector.broadcast %9 : vector<32x1xf32> to vector<32x256xf32>
    %11 = arith.addf %8, %10 : vector<32x256xf32>
    %cst_11 = arith.constant dense<0.000000e+00> : vector<4x256xf32>
    %12 = tpu.matmul %6, %11, %cst_11 {dimension_numbers = #tpu.dot_dimension_numbers<[1], [0], [0], [1], [0, 0, 1, 1], [], []>} : vector<4x32xf32>, vector<32x256xf32>, vector<4x256xf32> -> vector<4x256xf32>
    %c0_12 = arith.constant 0 : index
    %13 = memref.load %arg1[%c0_12] : memref<1xf32, #tpu.memory_space<smem>>
    %14 = vector.broadcast %13 : f32 to vector<4x256xf32>
    %15 = arith.mulf %14, %12 : vector<4x256xf32>
    %16 = arith.addf %1, %15 : vector<4x256xf32>
    %c0_13 = arith.constant 0 : index
    %c0_14 = arith.constant 0 : index
    %c0_15 = arith.constant 0 : index
    %17 = vector.load %arg7[%c0_13, %c0_14, %c0_15] : memref<1x4x256xf32, #tpu.memory_space<vmem>>, vector<1x4x256xf32>
    %18 = vector.shape_cast %17 : vector<1x4x256xf32> to vector<4x256xf32>
    %19 = vector.shape_cast %16 : vector<4x256xf32> to vector<1x4x256xf32>
    tpu.vector_store %arg7[%c0_13, %c0_14, %c0_15], %19 {strides = array<i32>} : memref<1x4x256xf32, #tpu.memory_space<vmem>>, vector<1x4x256xf32>,
    return
  }
  func.func @transform_0(%arg0: i32) -> i32 {
    %c0_i32 = arith.constant 0 : i32
    %c0_i32_0 = arith.constant 0 : i32
    return %c0_i32 : i32
  }
  func.func @transform_1(%arg0: i32) -> (i32, i32, i32) {
    %c0_i32 = arith.constant 0 : i32
    %c0_i32_0 = arith.constant 0 : i32
    %c0_i32_1 = arith.constant 0 : i32
    return %arg0, %c0_i32, %c0_i32_0 : i32, i32, i32
  }
  func.func @transform_2(%arg0: i32) -> (i32, i32) {
    %c0_i32 = arith.constant 0 : i32
    %c0_i32_0 = arith.constant 0 : i32
    %c0_i32_1 = arith.constant 0 : i32
    return %c0_i32, %c0_i32_0 : i32, i32
  }
  func.func @transform_3(%arg0: i32) -> (i32, i32) {
    %c0_i32 = arith.constant 0 : i32
    %c0_i32_0 = arith.constant 0 : i32
    %c0_i32_1 = arith.constant 0 : i32
    return %c0_i32, %c0_i32_0 : i32, i32
  }
  func.func @transform_4(%arg0: i32) -> (i32, i32) {
    %c0_i32 = arith.constant 0 : i32
    %c0_i32_0 = arith.constant 0 : i32
    %c0_i32_1 = arith.constant 0 : i32
    return %c0_i32, %c0_i32_0 : i32, i32
  }
  func.func @transform_5(%arg0: i32) -> (i32, i32) {
    %c0_i32 = arith.constant 0 : i32
    %c0_i32_0 = arith.constant 0 : i32
    %c0_i32_1 = arith.constant 0 : i32
    return %c0_i32, %c0_i32_0 : i32, i32
  }
  func.func @transform_6(%arg0: i32) -> (i32, i32, i32) {
    %c0_i32 = arith.constant 0 : i32
    %c0_i32_0 = arith.constant 0 : i32
    %c0_i32_1 = arith.constant 0 : i32
    return %arg0, %c0_i32, %c0_i32_0 : i32, i32, i32
  }
}

</mosaic_0001>

<llo_original>
// kernel: tpu_custom_call.1
$region0: #{tpu_custom_call.1}
  #allocation0 [shape = 'u32[]', space=smem, size = 0x4, offset = 0x4, fixed_abs, tag = 'smem constant byte address 0x4 - core index']
  #allocation1 [shape = 'u32[72,128]{1,0:T(1,128)}', space=vmem, size = 0x9000, scoped, tag = 'internal scratch']
  #allocation2 [shape = 'f32[1]{0:T(128)S(6)}', space=smem, size = 0x200, scoped, tag = 'scoped memory for tpu_custom_call.1']
  %s0 = inlined_call_operand.<no memory space> [shape: f32[1], index: 0, kind: input, shape index: {}]
  %s1 = inlined_call_operand.hbm [shape: f32[2,4,256], index: 1, kind: input, shape index: {}]
  %s2 = inlined_call_operand.vmem [shape: f32[32,256], index: 2, kind: input, shape index: {}]
  %s3 = inlined_call_operand.vmem [shape: f32[1,32], index: 3, kind: input, shape index: {}]
  %s4 = inlined_call_operand.vmem [shape: f32[32,4], index: 4, kind: input, shape index: {}]
  %s5 = inlined_call_operand.vmem [shape: f32[32,1], index: 5, kind: input, shape index: {}]
  %s6 = inlined_call_operand.hbm [shape: f32[2,4,256], index: 6, kind: output, shape index: {}]
  %s7 = sld [smem:[#allocation0]]
  $region61: #{tpu_custom_call.1} parent=0
    _
  %s9 = ssub.s32 1, %s7
  %s10 = scalar_select 0, %s9, %s7
  %11 = sst [smem:[#allocation2]] %s0
  $region1: #{tpu_custom_call.1} parent=0
    #allocation3 [shape = 'u8[8192]{0}', space=vmem, size = 0x2000, scoped, tag = 'input window, operand 1']
    #allocation4 [shape = 's32[2]{0}', space=sflag, size = 0x8, scoped, tag = 'scoped memory for tpu_custom_call.1']
    #allocation5 [shape = 's32[2]{0}', space=sflag, size = 0x8, scoped, tag = 'scoped memory for tpu_custom_call.1']
    #allocation6 [shape = 'u8[8192]{0}', space=vmem, size = 0x2000, scoped, tag = 'output window, operand 0']
    %12 = vsyncpa [#allocation4], 0
    %s13 = scalar_lea.sflag [#allocation4], 1
    %14 = vsyncpa %s13, 0
    %15 = vsyncpa [#allocation5], 0
    %s16 = scalar_lea.sflag [#allocation5], 1
    %17 = vsyncpa %s16, 0
    loop: start=0, step=1, limit=4
    $region2: #{tpu_custom_call.1} parent=1 // loop_pre_header
      _
    $region3: #{tpu_custom_call.1} parent=1 // loop_header
      %s19 = sphi 0, %s23
      %p20 = scmp.ge.s32.totalorder %s19, 4
      %s27 = sphi 0, %s27
      %s29 = sphi 0, %s27
      %s30 = sphi 0, %s29
      %s44 = sphi 0, %s30
      %s50 = sphi 0, %s52
      %s53 = sphi 0, %s50
      %s54 = sphi 0, %s53
      %s70 = sphi 0, %s54
      %s74 = sphi 0, %s74
      %s76 = sphi 0, %s74
      %s77 = sphi 0, %s76
      %s91 = sphi 0, %s77
      %s95 = sphi 0, %s95
      %s97 = sphi 0, %s95
      %s98 = sphi 0, %s97
      %s112 = sphi 0, %s98
      %s116 = sphi 0, %s116
      %s118 = sphi 0, %s116
      %s119 = sphi 0, %s118
      %s133 = sphi 0, %s119
      %s137 = sphi 0, %s137
      %s139 = sphi 0, %s137
      %s140 = sphi 0, %s139
      %s154 = sphi 0, %s140
      %s160 = sphi 0, %s162
      %s163 = sphi 0, %s160
      %s164 = sphi 0, %s163
      %s180 = sphi 0, %s164
    $region4: #{tpu_custom_call.1} parent=1 // loop_header_branch
      %22 = sbr.rel (%p20) target = $region8
    $region5: #{tpu_custom_call.1} parent=1 // loop_body
      %s24 = ssub.s32 %s19, 1
      %s25 = ssub.s32 %s19, 2
      %s26 = sadd.s32 %s19, 1
      %s28 = sadd.s32 %s27, 1
      %p31 = scmp.eq.s32.totalorder %s19, 1
      %p32 = scmp.ne.s32.totalorder %s27, %s29
      %p33 = scmp.eq.s32.totalorder %s19, 0
      %p34 = por %p32, %p33
      %p35 = scmp.ne.s32.totalorder %s27, %s29
      %p36 = scmp.eq.s32.totalorder %s24, 1
      %p37 = por %p35, %p36
      %p38 = scmp.ne.s32.totalorder %s29, %s30
      %p39 = scmp.eq.s32.totalorder %s24, 0
      %p40 = por %p38, %p39
      %p41 = scmp.ne.s32.totalorder %s29, %s30
      %p42 = scmp.eq.s32.totalorder %s25, 1
      %p43 = por %p41, %p42
      %p45 = scmp.ne.s32.totalorder %s30, %s44
      %p46 = scmp.eq.s32.totalorder %s25, 0
      %p47 = por %p45, %p46
      %s48 = ssub.s32 %s19, %s26
      %p49 = scmp.eq.s32.totalorder %s48, 0
      %s51 = sadd.s32 %s50, 1
      %s52 = scalar_select %p49, %s50, %s51
      %p55 = pneg %p49
      %p56 = scmp.eq.s32.totalorder %s19, 1
      %p57 = por %p55, %p56
      %p58 = scmp.ne.s32.totalorder %s50, %s53
      %p59 = scmp.eq.s32.totalorder %s19, 0
      %p60 = por %p58, %p59
      %p61 = scmp.ne.s32.totalorder %s50, %s53
      %p62 = scmp.eq.s32.totalorder %s24, 1
      %p63 = por %p61, %p62
      %p64 = scmp.ne.s32.totalorder %s53, %s54
      %p65 = scmp.eq.s32.totalorder %s24, 0
      %p66 = por %p64, %p65
      %p67 = scmp.ne.s32.totalorder %s53, %s54
      %p68 = scmp.eq.s32.totalorder %s25, 1
      %p69 = por %p67, %p68
      %p71 = scmp.ne.s32.totalorder %s54, %s70
      %p72 = scmp.eq.s32.totalorder %s25, 0
      %p73 = por %p71, %p72
      %s75 = sadd.s32 %s74, 1
      %p78 = scmp.eq.s32.totalorder %s19, 1
      %p79 = scmp.ne.s32.totalorder %s74, %s76
      %p80 = scmp.eq.s32.totalorder %s19, 0
      %p81 = por %p79, %p80
      %p82 = scmp.ne.s32.totalorder %s74, %s76
      %p83 = scmp.eq.s32.totalorder %s24, 1
      %p84 = por %p82, %p83
      %p85 = scmp.ne.s32.totalorder %s76, %s77
      %p86 = scmp.eq.s32.totalorder %s24, 0
      %p87 = por %p85, %p86
      %p88 = scmp.ne.s32.totalorder %s76, %s77
      %p89 = scmp.eq.s32.totalorder %s25, 1
      %p90 = por %p88, %p89
      %p92 = scmp.ne.s32.totalorder %s77, %s91
      %p93 = scmp.eq.s32.totalorder %s25, 0
      %p94 = por %p92, %p93
      %s96 = sadd.s32 %s95, 1
      %p99 = scmp.eq.s32.totalorder %s19, 1
      %p100 = scmp.ne.s32.totalorder %s95, %s97
      %p101 = scmp.eq.s32.totalorder %s19, 0
      %p102 = por %p100, %p101
      %p103 = scmp.ne.s32.totalorder %s95, %s97
      %p104 = scmp.eq.s32.totalorder %s24, 1
      %p105 = por %p103, %p104
      %p106 = scmp.ne.s32.totalorder %s97, %s98
      %p107 = scmp.eq.s32.totalorder %s24, 0
      %p108 = por %p106, %p107
      %p109 = scmp.ne.s32.totalorder %s97, %s98
      %p110 = scmp.eq.s32.totalorder %s25, 1
      %p111 = por %p109, %p110
      %p113 = scmp.ne.s32.totalorder %s98, %s112
      %p114 = scmp.eq.s32.totalorder %s25, 0
      %p115 = por %p113, %p114
      %s117 = sadd.s32 %s116, 1
      %p120 = scmp.eq.s32.totalorder %s19, 1
      %p121 = scmp.ne.s32.totalorder %s116, %s118
      %p122 = scmp.eq.s32.totalorder %s19, 0
      %p123 = por %p121, %p122
      %p124 = scmp.ne.s32.totalorder %s116, %s118
      %p125 = scmp.eq.s32.totalorder %s24, 1
      %p126 = por %p124, %p125
      %p127 = scmp.ne.s32.totalorder %s118, %s119
      %p128 = scmp.eq.s32.totalorder %s24, 0
      %p129 = por %p127, %p128
      %p130 = scmp.ne.s32.totalorder %s118, %s119
      %p131 = scmp.eq.s32.totalorder %s25, 1
      %p132 = por %p130, %p131
      %p134 = scmp.ne.s32.totalorder %s119, %s133
      %p135 = scmp.eq.s32.totalorder %s25, 0
      %p136 = por %p134, %p135
      %s138 = sadd.s32 %s137, 1
      %p141 = scmp.eq.s32.totalorder %s19, 1
      %p142 = scmp.ne.s32.totalorder %s137, %s139
      %p143 = scmp.eq.s32.totalorder %s19, 0
      %p144 = por %p142, %p143
      %p145 = scmp.ne.s32.totalorder %s137, %s139
      %p146 = scmp.eq.s32.totalorder %s24, 1
      %p147 = por %p145, %p146
      %p148 = scmp.ne.s32.totalorder %s139, %s140
      %p149 = scmp.eq.s32.totalorder %s24, 0
      %p150 = por %p148, %p149
      %p151 = scmp.ne.s32.totalorder %s139, %s140
      %p152 = scmp.eq.s32.totalorder %s25, 1
      %p153 = por %p151, %p152
      %p155 = scmp.ne.s32.totalorder %s140, %s154
      %p156 = scmp.eq.s32.totalorder %s25, 0
      %p157 = por %p155, %p156
      %s158 = ssub.s32 %s19, %s26
      %p159 = scmp.eq.s32.totalorder %s158, 0
      %s161 = sadd.s32 %s160, 1
      %s162 = scalar_select %p159, %s160, %s161
      %p165 = pneg %p159
      %p166 = scmp.eq.s32.totalorder %s19, 1
      %p167 = por %p165, %p166
      %p168 = scmp.ne.s32.totalorder %s160, %s163
      %p169 = scmp.eq.s32.totalorder %s19, 0
      %p170 = por %p168, %p169
      %p171 = scmp.ne.s32.totalorder %s160, %s163
      %p172 = scmp.eq.s32.totalorder %s24, 1
      %p173 = por %p171, %p172
      %p174 = scmp.ne.s32.totalorder %s163, %s164
      %p175 = scmp.eq.s32.totalorder %s24, 0
      %p176 = por %p174, %p175
      %p177 = scmp.ne.s32.totalorder %s163, %s164
      %p178 = scmp.eq.s32.totalorder %s25, 1
      %p179 = por %p177, %p178
      %p181 = scmp.ne.s32.totalorder %s164, %s180
      %p182 = scmp.eq.s32.totalorder %s25, 0
      %p183 = por %p181, %p182
      %p184 = scmp.le.s32.totalorder 1, %s19
      %p185 = scmp.lt.s32.totalorder %s19, 3
      %p186 = pnand %p184, %p185
      %p187 = pneg %p186
      // Predicated region
      $region9: #{tpu_custom_call.1} parent=5 // pred_check
        _
      $region10: #{tpu_custom_call.1} parent=5 // pred_check_branch
        %189 = sbr.rel (%p186) target = $region12
      $region11: #{tpu_custom_call.1} parent=5 // pred_region
        %s190 = ssub.s32 %s19, 1
        // Predicated region
        $region13: #{tpu_custom_call.1} parent=11 // pred_check
          %p191 = pneg %p40
        $region14: #{tpu_custom_call.1} parent=11 // pred_check_branch
          %193 = sbr.rel (%p191) target = $region16
        $region15: #{tpu_custom_call.1} parent=11 // pred_region
          _
        $region16: #{tpu_custom_call.1} parent=11 // pred_fallthru
          _
        // Predicated region
        $region17: #{tpu_custom_call.1} parent=11 // pred_check
          %p194 = pneg %p87
        $region18: #{tpu_custom_call.1} parent=11 // pred_check_branch
          %196 = sbr.rel (%p194) target = $region20
        $region19: #{tpu_custom_call.1} parent=11 // pred_region
          _
        $region20: #{tpu_custom_call.1} parent=11 // pred_fallthru
          _
        // Predicated region
        $region21: #{tpu_custom_call.1} parent=11 // pred_check
          %p197 = pneg %p108
        $region22: #{tpu_custom_call.1} parent=11 // pred_check_branch
          %199 = sbr.rel (%p197) target = $region24
        $region23: #{tpu_custom_call.1} parent=11 // pred_region
          _
        $region24: #{tpu_custom_call.1} parent=11 // pred_fallthru
          _
        // Predicated region
        $region25: #{tpu_custom_call.1} parent=11 // pred_check
          %p200 = pneg %p129
        $region26: #{tpu_custom_call.1} parent=11 // pred_check_branch
          %202 = sbr.rel (%p200) target = $region28
        $region27: #{tpu_custom_call.1} parent=11 // pred_region
          _
        $region28: #{tpu_custom_call.1} parent=11 // pred_fallthru
          _
        // Predicated region
        $region29: #{tpu_custom_call.1} parent=11 // pred_check
          %p203 = pneg %p150
        $region30: #{tpu_custom_call.1} parent=11 // pred_check_branch
          %205 = sbr.rel (%p203) target = $region32
        $region31: #{tpu_custom_call.1} parent=11 // pred_region
          _
        $region32: #{tpu_custom_call.1} parent=11 // pred_fallthru
          _
      $region12: #{tpu_custom_call.1} parent=5 // pred_fallthru
        _
      %p206 = scmp.lt.s32.totalorder %s19, 2
      // Predicated region
      $region33: #{tpu_custom_call.1} parent=5 // pred_check
        %p207 = pneg %p206
      $region34: #{tpu_custom_call.1} parent=5 // pred_check_branch
        %209 = sbr.rel (%p207) target = $region36
      $region35: #{tpu_custom_call.1} parent=5 // pred_region
        // Predicated region
        $region37: #{tpu_custom_call.1} parent=35 // pred_check
          %p210 = pneg %p60
        $region38: #{tpu_custom_call.1} parent=35 // pred_check_branch
          %212 = sbr.rel (%p210) target = $region40
        $region39: #{tpu_custom_call.1} parent=35 // pred_region
          %s213 = sand.u32 %s50, 1
          %s214 = scalar_lea.sflag [#allocation4], %s213
          %s215 = sand.u32 %s50, 1
          %s216 = smul.addr %s215, 8
          %s217 = scalar_lea.vmem [#allocation3], %s216
          %219 = vsyncadd %s214, 0
          %s220 = smul.addr %s19, 2
          %s221 = smul.addr %s220, 4
          %s222 = scalar_lea.hbm %s1, %s221
          %s224 = sshll.u32 %s222, 4
          %s225 = int_to_ptr.hbm [resolvable:$true] %s224
          %s226 = sshll.u32 %s217, 4
          %s227 = int_to_ptr.vmem [resolvable:$true] %s226
          %229 = dma.hbm_to_vmem [thread:$0]  %s225, 128, %s227, %s214
        $region40: #{tpu_custom_call.1} parent=35 // pred_fallthru
          _
      $region36: #{tpu_custom_call.1} parent=5 // pred_fallthru
        _
      %p230 = scmp.le.s32.totalorder 1, %s19
      %p231 = scmp.lt.s32.totalorder %s19, 3
      %p232 = pnand %p230, %p231
      %p233 = pneg %p232
      // Predicated region
      $region41: #{tpu_custom_call.1} parent=5 // pred_check
        _
      $region42: #{tpu_custom_call.1} parent=5 // pred_check_branch
        %235 = sbr.rel (%p232) target = $region44
      $region43: #{tpu_custom_call.1} parent=5 // pred_region
        %s236 = ssub.s32 %s19, 1
        %s237 = sand.u32 %s53, 1
        %s238 = scalar_lea.sflag [#allocation4], %s237
        %s239 = sand.u32 %s53, 1
        %s240 = smul.addr %s239, 8
        %s241 = scalar_lea.vmem [#allocation3], %s240
        // Predicated region
        $region45: #{tpu_custom_call.1} parent=43 // pred_check
          %p242 = pneg %p66
        $region46: #{tpu_custom_call.1} parent=43 // pred_check_branch
          %244 = sbr.rel (%p242) target = $region48
        $region47: #{tpu_custom_call.1} parent=43 // pred_region
          %246 = dma.done %s238, 128
        $region48: #{tpu_custom_call.1} parent=43 // pred_fallthru
          _
        %p247 = pneg %p40
        %p248 = pneg %p37
        %s249 = sand.u32 %s53, 1
        %s250 = scalar_lea.sflag [#allocation4], %s249
        %s251 = sand.u32 %s53, 1
        %s252 = smul.addr %s251, 8
        %s253 = scalar_lea.vmem [#allocation3], %s252
        %p254 = pneg %p66
        %p255 = pneg %p63
        %p256 = pneg %p87
        %p257 = pneg %p84
        %p258 = pneg %p108
        %p259 = pneg %p105
        %p260 = pneg %p129
        %p261 = pneg %p126
        %p262 = pneg %p150
        %p263 = pneg %p147
        %p264 = pneg %p176
        %p265 = pneg %p173
        %s266 = sand.u32 %s163, 1
        %s267 = scalar_lea.sflag [#allocation5], %s266
        %s268 = sand.u32 %s163, 1
        %s269 = smul.addr %s268, 8
        %s270 = scalar_lea.vmem [#allocation6], %s269
        %v271 = vld [vmem:[%s241] sm:$0xff]
        %v272 = vld [vmem:[%s2] sm:$0xff]
        %v273 = vld [vmem:[%s2 + $0x8] sm:$0xff]
        %v274 = vld [vmem:[%s2 + $0x10] sm:$0xff]
        %v275 = vld [vmem:[%s2 + $0x18] sm:$0xff]
        %v276 = vld [vmem:[%s2 + $0x20] sm:$0xff]
        %v277 = vld [vmem:[%s2 + $0x28] sm:$0xff]
        %v278 = vld [vmem:[%s2 + $0x30] sm:$0xff]
        %v279 = vld [vmem:[%s2 + $0x38] sm:$0xff]
        %v280 = vld [vmem:[%s3] sm:$0x1]
        %v282 = vperm.slane %v280, 0
        %285 = vst [vmem:[#allocation1] ss:$2 sm:$0xff] %v271
        %v286 = vld.sshfl [vmem:[#allocation1] sm:$0xff pattern:$0x75316420]
        %v287 = vld.sshfl [vmem:[#allocation1 + $0x8] sm:$0xff pattern:$0x75316420]
        %290 = vmatpush.xpose.msra.mxu0 0.0
        %291 = vmatpush.xpose.msra.mxu0 0.0
        %292 = vmatpush.xpose.msra.mxu0 0.0
        %293 = vmatpush.xpose.msra.mxu0 0.0
        %294 = vmatpush.xpose.msra.mxu0 0.0
        %295 = vmatpush.xpose.msra.mxu0 0.0
        %296 = vmatpush.xpose.msra.mxu0 0.0
        %297 = vmatpush.xpose.msra.mxu0 0.0
        %298 = vmatpush.xpose.msra.mxu0 0.0
        %299 = vmatpush.xpose.msra.mxu0 0.0
        %300 = vmatpush.xpose.msra.mxu0 0.0
        %301 = vmatpush.xpose.msra.mxu0 0.0
        %302 = vmatpush.xpose.msra.mxu0 %v278
        %303 = vmatpush.xpose.msra.mxu0 %v276
        %304 = vmatpush.xpose.msra.mxu0 %v274
        %305 = vmatpush.xpose.msra.mxu0 %v272
        %306 = vmatmul.f32.gmra.mxu0 %v286
        %v307 = vpop.f32.mrf.mxu0
        %v308 = vadd.f32 %v282, %v307
        %309 = vdwg.mxu0
        %310 = vmatpush.xpose.msra.mxu0 0.0
        %311 = vmatpush.xpose.msra.mxu0 0.0
        %312 = vmatpush.xpose.msra.mxu0 0.0
        %313 = vmatpush.xpose.msra.mxu0 0.0
        %314 = vmatpush.xpose.msra.mxu0 0.0
        %315 = vmatpush.xpose.msra.mxu0 0.0
        %316 = vmatpush.xpose.msra.mxu0 0.0
        %317 = vmatpush.xpose.msra.mxu0 0.0
        %318 = vmatpush.xpose.msra.mxu0 0.0
        %319 = vmatpush.xpose.msra.mxu0 0.0
        %320 = vmatpush.xpose.msra.mxu0 0.0
        %321 = vmatpush.xpose.msra.mxu0 0.0
        %322 = vmatpush.xpose.msra.mxu0 %v279
        %323 = vmatpush.xpose.msra.mxu0 %v277
        %324 = vmatpush.xpose.msra.mxu0 %v275
        %325 = vmatpush.xpose.msra.mxu0 %v273
        %326 = vmatmul.f32.gmra.mxu0 %v287
        %v327 = vpop.f32.mrf.mxu0
        %v328 = vadd.f32 %v308, %v327
        %329 = vdwg.mxu0
        %v330 = vld [vmem:[%s4] sm:$0xff]
        %v331 = vld [vmem:[%s4 + $0x8] sm:$0xff]
        %v332 = vld [vmem:[%s4 + $0x10] sm:$0xff]
        %v333 = vld [vmem:[%s4 + $0x18] sm:$0xff]
        %v334 = vld [vmem:[%s5] sm:$0xff]
        %v335 = vld [vmem:[%s5 + $0x8] sm:$0xff]
        %v336 = vld [vmem:[%s5 + $0x10] sm:$0xff]
        %v337 = vld [vmem:[%s5 + $0x18] sm:$0xff]
        %339 = vset.pattern.permute.xlu0 0
        %340 = vperm.xlu0 %339, %v334
        %v341 = vpop.permute.xlu0 %340
        %344 = vset.pattern.permute.xlu0 0
        %345 = vperm.xlu0 %344, %v335
        %v346 = vpop.permute.xlu0 %345
        %349 = vset.pattern.permute.xlu0 0
        %350 = vperm.xlu0 %349, %v336
        %v351 = vpop.permute.xlu0 %350
        %354 = vset.pattern.permute.xlu0 0
        %355 = vperm.xlu0 %354, %v337
        %v356 = vpop.permute.xlu0 %355
        %358 = vst [vmem:[#allocation1] ss:$2 sm:$0xff] %v271
        %v359 = vld.sshfl [vmem:[#allocation1] sm:$0xff pattern:$0x75316420]
        %v360 = vld.sshfl [vmem:[#allocation1 + $0x8] sm:$0xff pattern:$0x75316420]
        %vm361 = vcmask 31744
        %v363 = vsel %vm361, %v330, 0
        %v366 = vsel %vm361, %v331, 0
        %v369 = vsel %vm361, %v332, 0
        %v372 = vsel %vm361, %v333, 0
        %vm374 = vcmask 1043456
        %v375 = vsel %vm374, %v359, 0
        %v377 = vsel %vm374, %v360, 0
        %379 = vmatpush.msra.mxu0 0.0
        %380 = vmatpush.msra.mxu0 0.0
        %381 = vmatpush.msra.mxu0 0.0
        %382 = vmatpush.msra.mxu0 0.0
        %383 = vmatpush.msra.mxu0 0.0
        %384 = vmatpush.msra.mxu0 0.0
        %385 = vmatpush.msra.mxu0 0.0
        %386 = vmatpush.msra.mxu0 0.0
        %387 = vmatpush.msra.mxu0 0.0
        %388 = vmatpush.msra.mxu0 0.0
        %389 = vmatpush.msra.mxu0 0.0
        %390 = vmatpush.msra.mxu0 0.0
        %391 = vmatpush.msra.mxu0 0.0
        %392 = vmatpush.msra.mxu0 0.0
        %393 = vmatpush.msra.mxu0 0.0
        %394 = vmatpush.msra.mxu0 %v375
        %395 = vmatmul.f32.gmra.mxu0 %v363
        %v396 = vpop.f32.mrf.mxu0
        %v397 = vadd.f32 %v341, %v396
        %398 = vmatmul.f32.gmra.mxu0 %v366
        %v399 = vpop.f32.mrf.mxu0
        %v400 = vadd.f32 %v346, %v399
        %401 = vmatmul.f32.gmra.mxu0 %v369
        %v402 = vpop.f32.mrf.mxu0
        %v403 = vadd.f32 %v351, %v402
        %404 = vmatmul.f32.gmra.mxu0 %v372
        %v405 = vpop.f32.mrf.mxu0
        %v406 = vadd.f32 %v356, %v405
        %407 = vdwg.mxu0
        %408 = vmatpush.msra.mxu0 0.0
        %409 = vmatpush.msra.mxu0 0.0
        %410 = vmatpush.msra.mxu0 0.0
        %411 = vmatpush.msra.mxu0 0.0
        %412 = vmatpush.msra.mxu0 0.0
        %413 = vmatpush.msra.mxu0 0.0
        %414 = vmatpush.msra.mxu0 0.0
        %415 = vmatpush.msra.mxu0 0.0
        %416 = vmatpush.msra.mxu0 0.0
        %417 = vmatpush.msra.mxu0 0.0
        %418 = vmatpush.msra.mxu0 0.0
        %419 = vmatpush.msra.mxu0 0.0
        %420 = vmatpush.msra.mxu0 0.0
        %421 = vmatpush.msra.mxu0 0.0
        %422 = vmatpush.msra.mxu0 0.0
        %423 = vmatpush.msra.mxu0 %v377
        %424 = vmatmul.f32.gmra.mxu0 %v363
        %v425 = vpop.f32.mrf.mxu0
        %v426 = vadd.f32 %v341, %v425
        %427 = vmatmul.f32.gmra.mxu0 %v366
        %v428 = vpop.f32.mrf.mxu0
        %v429 = vadd.f32 %v346, %v428
        %430 = vmatmul.f32.gmra.mxu0 %v369
        %v431 = vpop.f32.mrf.mxu0
        %v432 = vadd.f32 %v351, %v431
        %433 = vmatmul.f32.gmra.mxu0 %v372
        %v434 = vpop.f32.mrf.mxu0
        %v435 = vadd.f32 %v356, %v434
        %436 = vdwg.mxu0
        %vm437 = vcmask 261120
        %v439 = vsel %vm437, %v328, 0
        %441 = vmatpush.msra.mxu0 0.0
        %442 = vmatpush.msra.mxu0 0.0
        %443 = vmatpush.msra.mxu0 0.0
        %444 = vmatpush.msra.mxu0 0.0
        %445 = vmatpush.msra.mxu0 0.0
        %446 = vmatpush.msra.mxu0 0.0
        %447 = vmatpush.msra.mxu0 0.0
        %448 = vmatpush.msra.mxu0 0.0
        %449 = vmatpush.msra.mxu0 0.0
        %450 = vmatpush.msra.mxu0 0.0
        %451 = vmatpush.msra.mxu0 0.0
        %452 = vmatpush.msra.mxu0 0.0
        %453 = vmatpush.msra.mxu0 %v406
        %454 = vmatpush.msra.mxu0 %v403
        %455 = vmatpush.msra.mxu0 %v400
        %456 = vmatpush.msra.mxu0 %v397
        %457 = vmatmul.f32.gmra.mxu0 %v439
        %v458 = vpop.f32.mrf.mxu0
        %v459 = vadd.f32 0.0, %v458
        %460 = vdwg.mxu0
        %461 = vmatpush.msra.mxu0 0.0
        %462 = vmatpush.msra.mxu0 0.0
        %463 = vmatpush.msra.mxu0 0.0
        %464 = vmatpush.msra.mxu0 0.0
        %465 = vmatpush.msra.mxu0 0.0
        %466 = vmatpush.msra.mxu0 0.0
        %467 = vmatpush.msra.mxu0 0.0
        %468 = vmatpush.msra.mxu0 0.0
        %469 = vmatpush.msra.mxu0 0.0
        %470 = vmatpush.msra.mxu0 0.0
        %471 = vmatpush.msra.mxu0 0.0
        %472 = vmatpush.msra.mxu0 0.0
        %473 = vmatpush.msra.mxu0 %v435
        %474 = vmatpush.msra.mxu0 %v432
        %475 = vmatpush.msra.mxu0 %v429
        %476 = vmatpush.msra.mxu0 %v426
        %477 = vmatmul.f32.gmra.mxu0 %v439
        %v478 = vpop.f32.mrf.mxu0
        %v479 = vadd.f32 0.0, %v478
        %480 = vdwg.mxu0
        %s481 = sld [smem:[#allocation2]]
        %v482 = vstv %s481
        %v483 = vmul.f32 %v482, %v459
        %v484 = vmul.f32 %v482, %v479
        %v487 = vrot.slane %v484, 4
        %v488 = vsel %vm374, %v483, %v487
        %v490 = vadd.f32 %v271, %v488
        %491 = vst [vmem:[%s270] sm:$0xff] %v490
        %s492 = sand.u32 %s163, 1
        %s493 = scalar_lea.sflag [#allocation5], %s492
        %s494 = sand.u32 %s163, 1
        %s495 = smul.addr %s494, 8
        %s496 = scalar_lea.vmem [#allocation6], %s495
        // Predicated region
        $region49: #{tpu_custom_call.1} parent=43 // pred_check
          %p497 = pneg %p173
        $region50: #{tpu_custom_call.1} parent=43 // pred_check_branch
          %499 = sbr.rel (%p497) target = $region52
        $region51: #{tpu_custom_call.1} parent=43 // pred_region
          %501 = vsyncadd %s493, 0
          %s502 = smul.addr %s24, 2
          %s503 = smul.addr %s502, 4
          %s504 = scalar_lea.hbm %s6, %s503
          %s506 = sshll.u32 %s496, 4
          %s507 = int_to_ptr.vmem [resolvable:$true] %s506
          %s508 = sshll.u32 %s504, 4
          %s509 = int_to_ptr.hbm [resolvable:$true] %s508
          %511 = dma.vmem_to_hbm [thread:$0]  %s507, 128, %s509, %s493
        $region52: #{tpu_custom_call.1} parent=43 // pred_fallthru
          _
      $region44: #{tpu_custom_call.1} parent=5 // pred_fallthru
        _
      %p512 = scmp.le.s32.totalorder 2, %s19
      // Predicated region
      $region53: #{tpu_custom_call.1} parent=5 // pred_check
        %p513 = pneg %p512
      $region54: #{tpu_custom_call.1} parent=5 // pred_check_branch
        %515 = sbr.rel (%p513) target = $region56
      $region55: #{tpu_custom_call.1} parent=5 // pred_region
        %s516 = ssub.s32 %s19, 2
        // Predicated region
        $region57: #{tpu_custom_call.1} parent=55 // pred_check
          %p517 = pneg %p179
        $region58: #{tpu_custom_call.1} parent=55 // pred_check_branch
          %519 = sbr.rel (%p517) target = $region60
        $region59: #{tpu_custom_call.1} parent=55 // pred_region
          %s520 = sand.u32 %s164, 1
          %s521 = scalar_lea.sflag [#allocation5], %s520
          %s522 = sand.u32 %s164, 1
          %s523 = smul.addr %s522, 8
          %s524 = scalar_lea.vmem [#allocation6], %s523
          %526 = dma.done %s521, 128
        $region60: #{tpu_custom_call.1} parent=55 // pred_fallthru
          _
      $region56: #{tpu_custom_call.1} parent=5 // pred_fallthru
        _
    $region6: #{tpu_custom_call.1} parent=1 // loop_footer
      %s23 = sadd.s32 1, %s19
    $region7: #{tpu_custom_call.1} parent=1 // loop_footer_branch
      %18 = sbr.rel target = $region3
    $region8: #{tpu_custom_call.1} parent=1 // loop_exit
      _
    %527 = vsyncpa [#allocation4], 1
    %s528 = scalar_lea.sflag [#allocation4], 1
    %529 = vsyncpa %s528, 1
    %530 = vsyncpa [#allocation5], 1
    %s531 = scalar_lea.sflag [#allocation5], 1
    %532 = vsyncpa %s531, 1

</llo_original>
